<compile_context>
chip_gen: v7x
topology: tpu7x:2x2x1
jax: 0.10.0
libtpu: 0.0.40
codegen_flags: <defaults>
</compile_context>

<pallas_src>
import jax
import jax.numpy as jnp
from jax import lax
from jax.experimental import pallas as pl
from jax.experimental.pallas import tpu as pltpu

# "constant" module values from the original repo, chosen small here.
EMBEDDING_SIZE = 32   # constant.embedding_size
HIDDEN_SIZE = 32      # constant.hidden_size


def _pick_tn(n):
    """Batch-tile size: multiple of 8 (or full N); prefer >=2 tiles (megacore)."""
    if n % 8 != 0:
        return n
    start = min(n, 256)
    start -= start % 8
    for tn in range(start, 7, -8):
        if n % tn == 0 and n // tn >= 2:
            return tn
    return n


def _pick_tb(t, qb):
    """Time-chunk size: keep in the 8..32 range, multiple of the store quad."""
    if qb > 1 and t % qb != 0:
        return t, 1                      # ragged fallback: one full-time chunk
    for tb in (32, 16, 8, qb):
        if tb <= t and t % tb == 0 and tb % qb == 0:
            return tb, qb
    return t, qb


def lstm_forward_pallas(x4h_tm, w_hh_t, *, tb=None, tn=None):
    """Single-layer unidirectional LSTM over pre-projected inputs.

    x4h_tm : (T, N, 4H) f32  pre-projected inputs (x @ W_ih.T + b_ih + b_hh)
    w_hh_t : (H, 4H)    bf16 hidden->gates weight, already transposed
    Returns (N, T*H) f32 hidden states (lane-dense; reshape to (N,T,H) is free).
    """
    T, N, G = x4h_tm.shape
    H = w_hh_t.shape[0]
    assert G == 4 * H

    # Pack QB consecutive timesteps into one 128-lane-aligned output store.
    QB = 128 // H if 128 % H == 0 else 1

    if tb is None:
        TB, QB = _pick_tb(T, QB)
    else:
        TB = tb
        if TB % QB != 0:
            QB = 1
    TN = _pick_tn(N) if tn is None else tn

    assert T % TB == 0 and N % TN == 0
    assert (TN % 8 == 0) or (TN == N)
    assert ((TB * H) % 128 == 0) or (TB == T)

    nq = TB // QB
    unroll = min(nq, 2)   # each body iteration already covers QB timesteps

    def kernel(x4h_ref, whh_ref, out_ref, h_scr, c_scr):
        # x4h_ref : (TB, TN, 4H) f32
        # whh_ref : (H, 4H)      bf16
        # out_ref : (TN, TB*H)   f32   lane-dense batch-major output block
        # h_scr/c_scr : (TN, H)  f32   LSTM state carried across time chunks
        t_chunk = pl.program_id(1)           # inner, sequential time-chunk axis

        @pl.when(t_chunk == 0)
        def _():
            h_scr[...] = jnp.zeros_like(h_scr)
            c_scr[...] = jnp.zeros_like(c_scr)

        w_hh = whh_ref[...]                  # resident for the whole chunk
        # Hoisted lane mask for the g-gate lanes [2H, 3H) of the fused (TN,4H)
        # activation (JAX does not CSE broadcasts -> build once per grid step).
        lane = lax.broadcasted_iota(jnp.int32, (TN, 4 * H), 1)
        g_mask = (lane >= 2 * H) & (lane < 3 * H)

        def quad_body(q, carry):
            h, c = carry                     # vreg-resident state, no VMEM trip
            outs = []
            for j in range(QB):              # tiny static micro-unroll
                x4h = x4h_ref[q * QB + j]    # (TN, 4H) f32, dynamic first-axis
                gates = x4h + jnp.dot(h.astype(jnp.bfloat16), w_hh,
                                      preferred_element_type=jnp.float32)
                # Two full-width EUP passes + one VPU select instead of four
                # quarter-utilized sliced activations.
                sig = jax.nn.sigmoid(gates)
                th = jnp.tanh(gates)
                act = jnp.where(g_mask, th, sig)          # (TN, 4H)
                i_g = act[:, 0 * H:1 * H]
                f_g = act[:, 1 * H:2 * H]
                g_g = act[:, 2 * H:3 * H]
                o_g = act[:, 3 * H:4 * H]
                c = f_g * c + i_g * g_g
                h = o_g * jnp.tanh(c)
                outs.append(h)
            # One lane-dense, 128-aligned store per QB timesteps.
            block = outs[0] if QB == 1 else jnp.concatenate(outs, axis=-1)
            off = pl.multiple_of(q * (QB * H), QB * H)
            out_ref[:, pl.ds(off, QB * H)] = block
            return h, c

        h_fin, c_fin = lax.fori_loop(0, nq, quad_body,
                                     (h_scr[...], c_scr[...]), unroll=unroll)
        h_scr[...] = h_fin                   # scratch written once per chunk
        c_scr[...] = c_fin

    # TODO(synk): for very large N/T, retune TB/TN per TPU generation (v7x has
    # 64 MiB VMEM) and set vmem_limit_bytes explicitly; defaults here target
    # small shapes.
    return pl.pallas_call(
        kernel,
        out_shape=jax.ShapeDtypeStruct((N, T * H), jnp.float32),
        grid_spec=pltpu.PrefetchScalarGridSpec(
            num_scalar_prefetch=0,
            grid=(N // TN, T // TB),         # batch tiles outer, time inner
            in_specs=[
                pl.BlockSpec((TB, TN, 4 * H), lambda n, t: (t, n, 0)),
                pl.BlockSpec((H, 4 * H), lambda n, t: (0, 0)),
            ],
            out_specs=pl.BlockSpec((TN, TB * H), lambda n, t: (n, t)),
            scratch_shapes=[
                pltpu.VMEM((TN, H), jnp.float32),   # h state
                pltpu.VMEM((TN, H), jnp.float32),   # c state
            ],
        ),
        compiler_params=pltpu.CompilerParams(
            # batch axis independent (v7x megacore); time axis is a recurrence
            dimension_semantics=("parallel", "arbitrary"),
        ),
    )(x4h_tm, w_hh_t)


class UtteranceEncoderPallas:
    """JAX/Pallas port of UtteranceEncoder (unidirectional LSTM, n_layers=1,
    input_dropout=0 -> identity, no bidirectional projection)."""

    def __init__(self, vocab_size, key):
        k_emb, k_wih, k_whh, k_bih, k_bhh = jax.random.split(key, 5)
        # nn.Embedding weight ~ U(-0.1, 0.1) (init_embedding with word_emb=None)
        self.emb = jax.random.uniform(
            k_emb, (vocab_size, EMBEDDING_SIZE), jnp.float32, -0.1, 0.1
        )
        # nn.LSTM default init: U(-1/sqrt(H), 1/sqrt(H)); gate order (i, f, g, o)
        s = 1.0 / float(HIDDEN_SIZE) ** 0.5
        self.w_ih = jax.random.uniform(
            k_wih, (4 * HIDDEN_SIZE, EMBEDDING_SIZE), jnp.float32, -s, s
        )
        self.w_hh = jax.random.uniform(
            k_whh, (4 * HIDDEN_SIZE, HIDDEN_SIZE), jnp.float32, -s, s
        )
        self.b_ih = jax.random.uniform(k_bih, (4 * HIDDEN_SIZE,), jnp.float32, -s, s)
        self.b_hh = jax.random.uniform(k_bhh, (4 * HIDDEN_SIZE,), jnp.float32, -s, s)

        # Fold input projection + combined bias into the embedding table (f32):
        #   x_t @ W_ih.T + b_ih + b_hh == gather(emb @ W_ih.T + b, token)
        self.emb_proj = (
            jnp.dot(self.emb, self.w_ih.T) + (self.b_ih + self.b_hh)[None, :]
        )                                                   # (vocab, 4H) f32
        self.w_hh_t = jnp.transpose(self.w_hh).astype(jnp.bfloat16)   # (H, 4H)

    def __call__(self, input_var, input_lens):
        shape = input_var.shape                       # (B, D, T)
        flat = input_var.reshape(-1, shape[2])        # (N, T), N = B*D
        _ = input_lens.reshape(-1)                    # reshaped but unused, as in the PyTorch forward
        # input_dropout p=0 -> identity.
        # Time-major gather of the pre-projected gate inputs: transpose the
        # tiny (N, T) int token matrix instead of an (N, T, *) float tensor.
        x4h_tm = jnp.take(self.emb_proj, flat.T, axis=0)     # (T, N, 4H) f32
        out_flat = lstm_forward_pallas(x4h_tm, self.w_hh_t)  # (N, T*H) f32
        word_output = out_flat.reshape(flat.shape[0], shape[2], HIDDEN_SIZE)
        return word_output, shape


def lstm_reference(emb, w_ih, w_hh, b_ih, b_hh, tokens):
    """Pure-JAX f32 LSTM matching PyTorch nn.LSTM(batch_first=True) semantics."""
    x = jnp.take(emb, tokens, axis=0)                 # (N, T, E)
    H = w_hh.shape[1]
    N = tokens.shape[0]

    def step(carry, x_t):
        h, c = carry
        gates = x_t @ w_ih.T + h @ w_hh.T + b_ih + b_hh
        i_g = jax.nn.sigmoid(gates[:, 0 * H:1 * H])
        f_g = jax.nn.sigmoid(gates[:, 1 * H:2 * H])
        g_g = jnp.tanh(gates[:, 2 * H:3 * H])
        o_g = jax.nn.sigmoid(gates[:, 3 * H:4 * H])
        c = f_g * c + i_g * g_g
        h = o_g * jnp.tanh(c)
        return (h, c), h

    h0 = jnp.zeros((N, H), jnp.float32)
    c0 = jnp.zeros((N, H), jnp.float32)
    _, hs = jax.lax.scan(step, (h0, c0), jnp.swapaxes(x, 0, 1))
    return jnp.swapaxes(hs, 0, 1)                     # (N, T, H)


if __name__ == "__main__":
    key = jax.random.PRNGKey(0)
    k_params, k_tok, k_len = jax.random.split(key, 3)

    VOCAB = 50
    B, D, T = 2, 4, 8   # input_var is (batch, num_utterances, seq_len) int tokens

    encoder = UtteranceEncoderPallas(VOCAB, k_params)

    input_var = jax.random.randint(k_tok, (B, D, T), 0, VOCAB, dtype=jnp.int32)
    input_lens = jax.random.randint(k_len, (B, D), 1, T + 1, dtype=jnp.int32)
    # TODO(synk): input_lens is ignored (matches the reference forward, which
    # does not pack_padded_sequence; the LSTM runs over all T positions).

    word_output, shape = encoder(input_var, input_lens)
    word_output = jax.block_until_ready(word_output)

    assert word_output.shape == (B * D, T, HIDDEN_SIZE)
    assert tuple(shape) == (B, D, T)

    # Correctness check against an f32 pure-JAX LSTM (only the recurrent
    # matmul operands are bf16 in the kernel).
    ref = lstm_reference(
        encoder.emb, encoder.w_ih, encoder.w_hh, encoder.b_ih, encoder.b_hh,
        input_var.reshape(-1, T),
    )
    max_err = float(jnp.max(jnp.abs(word_output - ref)))
    assert max_err < 2e-2, f"max abs err {max_err}"

    print("KERNEL_OK")
</pallas_src>

<mosaic_0001>
module attributes {stable_mosaic.version = 11 : i64} {
  func.func @kernel(%arg0: i32, %arg1: i32, %arg2: memref<8x8x128xf32, #tpu.memory_space<vmem>>, %arg3: memref<32x128xbf16, #tpu.memory_space<vmem>>, %arg4: memref<8x256xf32, #tpu.memory_space<vmem>>, %arg5: memref<8x32xf32, #tpu.memory_space<vmem>>, %arg6: memref<8x32xf32, #tpu.memory_space<vmem>>) attributes {dimension_semantics = [#tpu.dimension_semantics<parallel>, #tpu.dimension_semantics<arbitrary>], iteration_bounds = array<i64: 1, 1>, scalar_prefetch = 0 : i64, scratch_operands = 2 : i64, tpu.core_type = #tpu.core_type<tc>, window_params = [{transform_indices = @transform_0, window_bounds = array<i64: 8, 8, 128>}, {pipeline_mode = #tpu.pipeline_mode<synchronous>, transform_indices = @transform_1, window_bounds = array<i64: 32, 128>}, {transform_indices = @transform_2, window_bounds = array<i64: 8, 256>}]} {
    %c0_i32 = arith.constant 0 : i32
    %0 = arith.cmpi eq, %arg1, %c0_i32 : i32
    %1 = arith.extui %0 : i1 to i32
    %c0_i32_0 = arith.constant 0 : i32
    %2 = arith.cmpi ne, %1, %c0_i32_0 : i32
    scf.if %2 {
      %cst_59 = arith.constant 0.000000e+00 : f32
      %216 = vector.broadcast %cst_59 : f32 to vector<8x32xf32>
      %c0_60 = arith.constant 0 : index
      %c0_61 = arith.constant 0 : index
      %217 = vector.load %arg5[%c0_60, %c0_61] : memref<8x32xf32, #tpu.memory_space<vmem>>, vector<8x32xf32>
      tpu.vector_store %arg5[%c0_60, %c0_61], %216 {strides = array<i32>} : memref<8x32xf32, #tpu.memory_space<vmem>>, vector<8x32xf32>,
      %cst_62 = arith.constant 0.000000e+00 : f32
      %218 = vector.broadcast %cst_62 : f32 to vector<8x32xf32>
      %c0_63 = arith.constant 0 : index
      %c0_64 = arith.constant 0 : index
      %219 = vector.load %arg6[%c0_63, %c0_64] : memref<8x32xf32, #tpu.memory_space<vmem>>, vector<8x32xf32>
      tpu.vector_store %arg6[%c0_63, %c0_64], %218 {strides = array<i32>} : memref<8x32xf32, #tpu.memory_space<vmem>>, vector<8x32xf32>,
    } else {
    }
    %c0 = arith.constant 0 : index
    %c0_1 = arith.constant 0 : index
    %3 = vector.load %arg3[%c0, %c0_1] : memref<32x128xbf16, #tpu.memory_space<vmem>>, vector<32x128xbf16>
    %4 = tpu.iota {dimensions = array<i32: 1>} : vector<8x128xi32>
    %c64_i32 = arith.constant 64 : i32
    %5 = vector.broadcast %c64_i32 : i32 to vector<8x128xi32>
    %6 = arith.cmpi sge, %4, %5 : vector<8x128xi32>
    %c96_i32 = arith.constant 96 : i32
    %7 = vector.broadcast %c96_i32 : i32 to vector<8x128xi32>
    %8 = arith.cmpi slt, %4, %7 : vector<8x128xi32>
    %9 = arith.andi %6, %8 : vector<8x128xi1>
    %c0_2 = arith.constant 0 : index
    %c0_3 = arith.constant 0 : index
    %10 = vector.load %arg5[%c0_2, %c0_3] : memref<8x32xf32, #tpu.memory_space<vmem>>, vector<8x32xf32>
    %c0_4 = arith.constant 0 : index
    %c0_5 = arith.constant 0 : index
    %11 = vector.load %arg6[%c0_4, %c0_5] : memref<8x32xf32, #tpu.memory_space<vmem>>, vector<8x32xf32>
    %c0_i32_6 = arith.constant 0 : i32
    %c4_i32 = arith.constant 4 : i32
    %12 = arith.muli %c0_i32_6, %c4_i32 : i32
    %c0_i32_7 = arith.constant 0 : i32
    %13 = arith.addi %12, %c0_i32_7 : i32
    %14 = arith.index_cast %13 : i32 to index
    %c0_8 = arith.constant 0 : index
    %c0_9 = arith.constant 0 : index
    %15 = vector.load %arg2[%14, %c0_8, %c0_9] : memref<8x8x128xf32, #tpu.memory_space<vmem>>, vector<1x8x128xf32>
    %16 = vector.shape_cast %15 : vector<1x8x128xf32> to vector<8x128xf32>
    %17 = arith.truncf %10 : vector<8x32xf32> to vector<8x32xbf16>
    %cst = arith.constant dense<0.000000e+00> : vector<8x128xf32>
    %18 = tpu.matmul %17, %3, %cst {dimension_numbers = #tpu.dot_dimension_numbers<[1], [0], [0], [1], [0, 0, 1, 1], [], []>} : vector<8x32xbf16>, vector<32x128xbf16>, vector<8x128xf32> -> vector<8x128xf32>
    %19 = arith.addf %16, %18 : vector<8x128xf32>
    %20 = arith.negf %19 : vector<8x128xf32>
    %21 = math.exp %20 : vector<8x128xf32>
    %cst_10 = arith.constant 1.000000e+00 : f32
    %22 = vector.broadcast %cst_10 : f32 to vector<8x128xf32>
    %23 = arith.addf %22, %21 : vector<8x128xf32>
    %24 = arith.divf %22, %23 : vector<8x128xf32>
    %25 = math.tanh %19 : vector<8x128xf32>
    %26 = arith.select %9, %25, %24 : vector<8x128xi1>, vector<8x128xf32>
    %27 = vector.extract_strided_slice %26 {offsets = [0, 0], sizes = [8, 32], strides = [1, 1]} : vector<8x128xf32> to vector<8x32xf32>
    %28 = vector.extract_strided_slice %26 {offsets = [0, 32], sizes = [8, 32], strides = [1, 1]} : vector<8x128xf32> to vector<8x32xf32>
    %29 = vector.extract_strided_slice %26 {offsets = [0, 64], sizes = [8, 32], strides = [1, 1]} : vector<8x128xf32> to vector<8x32xf32>
    %30 = vector.extract_strided_slice %26 {offsets = [0, 96], sizes = [8, 32], strides = [1, 1]} : vector<8x128xf32> to vector<8x32xf32>
    %31 = arith.mulf %28, %11 : vector<8x32xf32>
    %32 = arith.mulf %27, %29 : vector<8x32xf32>
    %33 = arith.addf %31, %32 : vector<8x32xf32>
    %34 = math.tanh %33 : vector<8x32xf32>
    %35 = arith.mulf %30, %34 : vector<8x32xf32>
    %c4_i32_11 = arith.constant 4 : i32
    %36 = arith.muli %c0_i32_6, %c4_i32_11 : i32
    %c1_i32 = arith.constant 1 : i32
    %37 = arith.addi %36, %c1_i32 : i32
    %38 = arith.index_cast %37 : i32 to index
    %c0_12 = arith.constant 0 : index
    %c0_13 = arith.constant 0 : index
    %39 = vector.load %arg2[%38, %c0_12, %c0_13] : memref<8x8x128xf32, #tpu.memory_space<vmem>>, vector<1x8x128xf32>
    %40 = vector.shape_cast %39 : vector<1x8x128xf32> to vector<8x128xf32>
    %41 = arith.truncf %35 : vector<8x32xf32> to vector<8x32xbf16>
    %cst_14 = arith.constant dense<0.000000e+00> : vector<8x128xf32>
    %42 = tpu.matmul %41, %3, %cst_14 {dimension_numbers = #tpu.dot_dimension_numbers<[1], [0], [0], [1], [0, 0, 1, 1], [], []>} : vector<8x32xbf16>, vector<32x128xbf16>, vector<8x128xf32> -> vector<8x128xf32>
    %43 = arith.addf %40, %42 : vector<8x128xf32>
    %44 = arith.negf %43 : vector<8x128xf32>
    %45 = math.exp %44 : vector<8x128xf32>
    %cst_15 = arith.constant 1.000000e+00 : f32
    %46 = vector.broadcast %cst_15 : f32 to vector<8x128xf32>
    %47 = arith.addf %46, %45 : vector<8x128xf32>
    %48 = arith.divf %46, %47 : vector<8x128xf32>
    %49 = math.tanh %43 : vector<8x128xf32>
    %50 = arith.select %9, %49, %48 : vector<8x128xi1>, vector<8x128xf32>
    %51 = vector.extract_strided_slice %50 {offsets = [0, 0], sizes = [8, 32], strides = [1, 1]} : vector<8x128xf32> to vector<8x32xf32>
    %52 = vector.extract_strided_slice %50 {offsets = [0, 32], sizes = [8, 32], strides = [1, 1]} : vector<8x128xf32> to vector<8x32xf32>
    %53 = vector.extract_strided_slice %50 {offsets = [0, 64], sizes = [8, 32], strides = [1, 1]} : vector<8x128xf32> to vector<8x32xf32>
    %54 = vector.extract_strided_slice %50 {offsets = [0, 96], sizes = [8, 32], strides = [1, 1]} : vector<8x128xf32> to vector<8x32xf32>
    %55 = arith.mulf %52, %33 : vector<8x32xf32>
    %56 = arith.mulf %51, %53 : vector<8x32xf32>
    %57 = arith.addf %55, %56 : vector<8x32xf32>
    %58 = math.tanh %57 : vector<8x32xf32>
    %59 = arith.mulf %54, %58 : vector<8x32xf32>
    %c4_i32_16 = arith.constant 4 : i32
    %60 = arith.muli %c0_i32_6, %c4_i32_16 : i32
    %c2_i32 = arith.constant 2 : i32
    %61 = arith.addi %60, %c2_i32 : i32
    %62 = arith.index_cast %61 : i32 to index
    %c0_17 = arith.constant 0 : index
    %c0_18 = arith.constant 0 : index
    %63 = vector.load %arg2[%62, %c0_17, %c0_18] : memref<8x8x128xf32, #tpu.memory_space<vmem>>, vector<1x8x128xf32>
    %64 = vector.shape_cast %63 : vector<1x8x128xf32> to vector<8x128xf32>
    %65 = arith.truncf %59 : vector<8x32xf32> to vector<8x32xbf16>
    %cst_19 = arith.constant dense<0.000000e+00> : vector<8x128xf32>
    %66 = tpu.matmul %65, %3, %cst_19 {dimension_numbers = #tpu.dot_dimension_numbers<[1], [0], [0], [1], [0, 0, 1, 1], [], []>} : vector<8x32xbf16>, vector<32x128xbf16>, vector<8x128xf32> -> vector<8x128xf32>
    %67 = arith.addf %64, %66 : vector<8x128xf32>
    %68 = arith.negf %67 : vector<8x128xf32>
    %69 = math.exp %68 : vector<8x128xf32>
    %cst_20 = arith.constant 1.000000e+00 : f32
    %70 = vector.broadcast %cst_20 : f32 to vector<8x128xf32>
    %71 = arith.addf %70, %69 : vector<8x128xf32>
    %72 = arith.divf %70, %71 : vector<8x128xf32>
    %73 = math.tanh %67 : vector<8x128xf32>
    %74 = arith.select %9, %73, %72 : vector<8x128xi1>, vector<8x128xf32>
    %75 = vector.extract_strided_slice %74 {offsets = [0, 0], sizes = [8, 32], strides = [1, 1]} : vector<8x128xf32> to vector<8x32xf32>
    %76 = vector.extract_strided_slice %74 {offsets = [0, 32], sizes = [8, 32], strides = [1, 1]} : vector<8x128xf32> to vector<8x32xf32>
    %77 = vector.extract_strided_slice %74 {offsets = [0, 64], sizes = [8, 32], strides = [1, 1]} : vector<8x128xf32> to vector<8x32xf32>
    %78 = vector.extract_strided_slice %74 {offsets = [0, 96], sizes = [8, 32], strides = [1, 1]} : vector<8x128xf32> to vector<8x32xf32>
    %79 = arith.mulf %76, %57 : vector<8x32xf32>
    %80 = arith.mulf %75, %77 : vector<8x32xf32>
    %81 = arith.addf %79, %80 : vector<8x32xf32>
    %82 = math.tanh %81 : vector<8x32xf32>
    %83 = arith.mulf %78, %82 : vector<8x32xf32>
    %c4_i32_21 = arith.constant 4 : i32
    %84 = arith.muli %c0_i32_6, %c4_i32_21 : i32
    %c3_i32 = arith.constant 3 : i32
    %85 = arith.addi %84, %c3_i32 : i32
    %86 = arith.index_cast %85 : i32 to index
    %c0_22 = arith.constant 0 : index
    %c0_23 = arith.constant 0 : index
    %87 = vector.load %arg2[%86, %c0_22, %c0_23] : memref<8x8x128xf32, #tpu.memory_space<vmem>>, vector<1x8x128xf32>
    %88 = vector.shape_cast %87 : vector<1x8x128xf32> to vector<8x128xf32>
    %89 = arith.truncf %83 : vector<8x32xf32> to vector<8x32xbf16>
    %cst_24 = arith.constant dense<0.000000e+00> : vector<8x128xf32>
    %90 = tpu.matmul %89, %3, %cst_24 {dimension_numbers = #tpu.dot_dimension_numbers<[1], [0], [0], [1], [0, 0, 1, 1], [], []>} : vector<8x32xbf16>, vector<32x128xbf16>, vector<8x128xf32> -> vector<8x128xf32>
    %91 = arith.addf %88, %90 : vector<8x128xf32>
    %92 = arith.negf %91 : vector<8x128xf32>
    %93 = math.exp %92 : vector<8x128xf32>
    %cst_25 = arith.constant 1.000000e+00 : f32
    %94 = vector.broadcast %cst_25 : f32 to vector<8x128xf32>
    %95 = arith.addf %94, %93 : vector<8x128xf32>
    %96 = arith.divf %94, %95 : vector<8x128xf32>
    %97 = math.tanh %91 : vector<8x128xf32>
    %98 = arith.select %9, %97, %96 : vector<8x128xi1>, vector<8x128xf32>
    %99 = vector.extract_strided_slice %98 {offsets = [0, 0], sizes = [8, 32], strides = [1, 1]} : vector<8x128xf32> to vector<8x32xf32>
    %100 = vector.extract_strided_slice %98 {offsets = [0, 32], sizes = [8, 32], strides = [1, 1]} : vector<8x128xf32> to vector<8x32xf32>
    %101 = vector.extract_strided_slice %98 {offsets = [0, 64], sizes = [8, 32], strides = [1, 1]} : vector<8x128xf32> to vector<8x32xf32>
    %102 = vector.extract_strided_slice %98 {offsets = [0, 96], sizes = [8, 32], strides = [1, 1]} : vector<8x128xf32> to vector<8x32xf32>
    %103 = arith.mulf %100, %81 : vector<8x32xf32>
    %104 = arith.mulf %99, %101 : vector<8x32xf32>
    %105 = arith.addf %103, %104 : vector<8x32xf32>
    %106 = math.tanh %105 : vector<8x32xf32>
    %107 = arith.mulf %102, %106 : vector<8x32xf32>
    %108 = tpu.concatenate %35, %59, %83, %107 in 1 : vector<8x32xf32>, vector<8x32xf32>, vector<8x32xf32>, vector<8x32xf32> -> vector<8x128xf32>
    %c128_i32 = arith.constant 128 : i32
    %109 = arith.muli %c0_i32_6, %c128_i32 : i32
    %110 = tpu.assume_multiple %109, 128 : i32
    %c0_26 = arith.constant 0 : index
    %111 = arith.index_cast %110 : i32 to index
    %112 = vector.load %arg4[%c0_26, %111] : memref<8x256xf32, #tpu.memory_space<vmem>>, vector<8x128xf32>
    tpu.vector_store %arg4[%c0_26, %111], %108 {strides = array<i32>} : memref<8x256xf32, #tpu.memory_space<vmem>>, vector<8x128xf32>,
    %c1_i32_27 = arith.constant 1 : i32
    %c4_i32_28 = arith.constant 4 : i32
    %113 = arith.muli %c1_i32_27, %c4_i32_28 : i32
    %c0_i32_29 = arith.constant 0 : i32
    %114 = arith.addi %113, %c0_i32_29 : i32
    %115 = arith.index_cast %114 : i32 to index
    %c0_30 = arith.constant 0 : index
    %c0_31 = arith.constant 0 : index
    %116 = vector.load %arg2[%115, %c0_30, %c0_31] : memref<8x8x128xf32, #tpu.memory_space<vmem>>, vector<1x8x128xf32>
    %117 = vector.shape_cast %116 : vector<1x8x128xf32> to vector<8x128xf32>
    %118 = arith.truncf %107 : vector<8x32xf32> to vector<8x32xbf16>
    %cst_32 = arith.constant dense<0.000000e+00> : vector<8x128xf32>
    %119 = tpu.matmul %118, %3, %cst_32 {dimension_numbers = #tpu.dot_dimension_numbers<[1], [0], [0], [1], [0, 0, 1, 1], [], []>} : vector<8x32xbf16>, vector<32x128xbf16>, vector<8x128xf32> -> vector<8x128xf32>
    %120 = arith.addf %117, %119 : vector<8x128xf32>
    %121 = arith.negf %120 : vector<8x128xf32>
    %122 = math.exp %121 : vector<8x128xf32>
    %cst_33 = arith.constant 1.000000e+00 : f32
    %123 = vector.broadcast %cst_33 : f32 to vector<8x128xf32>
    %124 = arith.addf %123, %122 : vector<8x128xf32>
    %125 = arith.divf %123, %124 : vector<8x128xf32>
    %126 = math.tanh %120 : vector<8x128xf32>
    %127 = arith.select %9, %126, %125 : vector<8x128xi1>, vector<8x128xf32>
    %128 = vector.extract_strided_slice %127 {offsets = [0, 0], sizes = [8, 32], strides = [1, 1]} : vector<8x128xf32> to vector<8x32xf32>
    %129 = vector.extract_strided_slice %127 {offsets = [0, 32], sizes = [8, 32], strides = [1, 1]} : vector<8x128xf32> to vector<8x32xf32>
    %130 = vector.extract_strided_slice %127 {offsets = [0, 64], sizes = [8, 32], strides = [1, 1]} : vector<8x128xf32> to vector<8x32xf32>
    %131 = vector.extract_strided_slice %127 {offsets = [0, 96], sizes = [8, 32], strides = [1, 1]} : vector<8x128xf32> to vector<8x32xf32>
    %132 = arith.mulf %129, %105 : vector<8x32xf32>
    %133 = arith.mulf %128, %130 : vector<8x32xf32>
    %134 = arith.addf %132, %133 : vector<8x32xf32>
    %135 = math.tanh %134 : vector<8x32xf32>
    %136 = arith.mulf %131, %135 : vector<8x32xf32>
    %c4_i32_34 = arith.constant 4 : i32
    %137 = arith.muli %c1_i32_27, %c4_i32_34 : i32
    %c1_i32_35 = arith.constant 1 : i32
    %138 = arith.addi %137, %c1_i32_35 : i32
    %139 = arith.index_cast %138 : i32 to index
    %c0_36 = arith.constant 0 : index
    %c0_37 = arith.constant 0 : index
    %140 = vector.load %arg2[%139, %c0_36, %c0_37] : memref<8x8x128xf32, #tpu.memory_space<vmem>>, vector<1x8x128xf32>
    %141 = vector.shape_cast %140 : vector<1x8x128xf32> to vector<8x128xf32>
    %142 = arith.truncf %136 : vector<8x32xf32> to vector<8x32xbf16>
    %cst_38 = arith.constant dense<0.000000e+00> : vector<8x128xf32>
    %143 = tpu.matmul %142, %3, %cst_38 {dimension_numbers = #tpu.dot_dimension_numbers<[1], [0], [0], [1], [0, 0, 1, 1], [], []>} : vector<8x32xbf16>, vector<32x128xbf16>, vector<8x128xf32> -> vector<8x128xf32>
    %144 = arith.addf %141, %143 : vector<8x128xf32>
    %145 = arith.negf %144 : vector<8x128xf32>
    %146 = math.exp %145 : vector<8x128xf32>
    %cst_39 = arith.constant 1.000000e+00 : f32
    %147 = vector.broadcast %cst_39 : f32 to vector<8x128xf32>
    %148 = arith.addf %147, %146 : vector<8x128xf32>
    %149 = arith.divf %147, %148 : vector<8x128xf32>
    %150 = math.tanh %144 : vector<8x128xf32>
    %151 = arith.select %9, %150, %149 : vector<8x128xi1>, vector<8x128xf32>
    %152 = vector.extract_strided_slice %151 {offsets = [0, 0], sizes = [8, 32], strides = [1, 1]} : vector<8x128xf32> to vector<8x32xf32>
    %153 = vector.extract_strided_slice %151 {offsets = [0, 32], sizes = [8, 32], strides = [1, 1]} : vector<8x128xf32> to vector<8x32xf32>
    %154 = vector.extract_strided_slice %151 {offsets = [0, 64], sizes = [8, 32], strides = [1, 1]} : vector<8x128xf32> to vector<8x32xf32>
    %155 = vector.extract_strided_slice %151 {offsets = [0, 96], sizes = [8, 32], strides = [1, 1]} : vector<8x128xf32> to vector<8x32xf32>
    %156 = arith.mulf %153, %134 : vector<8x32xf32>
    %157 = arith.mulf %152, %154 : vector<8x32xf32>
    %158 = arith.addf %156, %157 : vector<8x32xf32>
    %159 = math.tanh %158 : vector<8x32xf32>
    %160 = arith.mulf %155, %159 : vector<8x32xf32>
    %c4_i32_40 = arith.constant 4 : i32
    %161 = arith.muli %c1_i32_27, %c4_i32_40 : i32
    %c2_i32_41 = arith.constant 2 : i32
    %162 = arith.addi %161, %c2_i32_41 : i32
    %163 = arith.index_cast %162 : i32 to index
    %c0_42 = arith.constant 0 : index
    %c0_43 = arith.constant 0 : index
    %164 = vector.load %arg2[%163, %c0_42, %c0_43] : memref<8x8x128xf32, #tpu.memory_space<vmem>>, vector<1x8x128xf32>
    %165 = vector.shape_cast %164 : vector<1x8x128xf32> to vector<8x128xf32>
    %166 = arith.truncf %160 : vector<8x32xf32> to vector<8x32xbf16>
    %cst_44 = arith.constant dense<0.000000e+00> : vector<8x128xf32>
    %167 = tpu.matmul %166, %3, %cst_44 {dimension_numbers = #tpu.dot_dimension_numbers<[1], [0], [0], [1], [0, 0, 1, 1], [], []>} : vector<8x32xbf16>, vector<32x128xbf16>, vector<8x128xf32> -> vector<8x128xf32>
    %168 = arith.addf %165, %167 : vector<8x128xf32>
    %169 = arith.negf %168 : vector<8x128xf32>
    %170 = math.exp %169 : vector<8x128xf32>
    %cst_45 = arith.constant 1.000000e+00 : f32
    %171 = vector.broadcast %cst_45 : f32 to vector<8x128xf32>
    %172 = arith.addf %171, %170 : vector<8x128xf32>
    %173 = arith.divf %171, %172 : vector<8x128xf32>
    %174 = math.tanh %168 : vector<8x128xf32>
    %175 = arith.select %9, %174, %173 : vector<8x128xi1>, vector<8x128xf32>
    %176 = vector.extract_strided_slice %175 {offsets = [0, 0], sizes = [8, 32], strides = [1, 1]} : vector<8x128xf32> to vector<8x32xf32>
    %177 = vector.extract_strided_slice %175 {offsets = [0, 32], sizes = [8, 32], strides = [1, 1]} : vector<8x128xf32> to vector<8x32xf32>
    %178 = vector.extract_strided_slice %175 {offsets = [0, 64], sizes = [8, 32], strides = [1, 1]} : vector<8x128xf32> to vector<8x32xf32>
    %179 = vector.extract_strided_slice %175 {offsets = [0, 96], sizes = [8, 32], strides = [1, 1]} : vector<8x128xf32> to vector<8x32xf32>
    %180 = arith.mulf %177, %158 : vector<8x32xf32>
    %181 = arith.mulf %176, %178 : vector<8x32xf32>
    %182 = arith.addf %180, %181 : vector<8x32xf32>
    %183 = math.tanh %182 : vector<8x32xf32>
    %184 = arith.mulf %179, %183 : vector<8x32xf32>
    %c4_i32_46 = arith.constant 4 : i32
    %185 = arith.muli %c1_i32_27, %c4_i32_46 : i32
    %c3_i32_47 = arith.constant 3 : i32
    %186 = arith.addi %185, %c3_i32_47 : i32
    %187 = arith.index_cast %186 : i32 to index
    %c0_48 = arith.constant 0 : index
    %c0_49 = arith.constant 0 : index
    %188 = vector.load %arg2[%187, %c0_48, %c0_49] : memref<8x8x128xf32, #tpu.memory_space<vmem>>, vector<1x8x128xf32>
    %189 = vector.shape_cast %188 : vector<1x8x128xf32> to vector<8x128xf32>
    %190 = arith.truncf %184 : vector<8x32xf32> to vector<8x32xbf16>
    %cst_50 = arith.constant dense<0.000000e+00> : vector<8x128xf32>
    %191 = tpu.matmul %190, %3, %cst_50 {dimension_numbers = #tpu.dot_dimension_numbers<[1], [0], [0], [1], [0, 0, 1, 1], [], []>} : vector<8x32xbf16>, vector<32x128xbf16>, vector<8x128xf32> -> vector<8x128xf32>
    %192 = arith.addf %189, %191 : vector<8x128xf32>
    %193 = arith.negf %192 : vector<8x128xf32>
    %194 = math.exp %193 : vector<8x128xf32>
    %cst_51 = arith.constant 1.000000e+00 : f32
    %195 = vector.broadcast %cst_51 : f32 to vector<8x128xf32>
    %196 = arith.addf %195, %194 : vector<8x128xf32>
    %197 = arith.divf %195, %196 : vector<8x128xf32>
    %198 = math.tanh %192 : vector<8x128xf32>
    %199 = arith.select %9, %198, %197 : vector<8x128xi1>, vector<8x128xf32>
    %200 = vector.extract_strided_slice %199 {offsets = [0, 0], sizes = [8, 32], strides = [1, 1]} : vector<8x128xf32> to vector<8x32xf32>
    %201 = vector.extract_strided_slice %199 {offsets = [0, 32], sizes = [8, 32], strides = [1, 1]} : vector<8x128xf32> to vector<8x32xf32>
    %202 = vector.extract_strided_slice %199 {offsets = [0, 64], sizes = [8, 32], strides = [1, 1]} : vector<8x128xf32> to vector<8x32xf32>
    %203 = vector.extract_strided_slice %199 {offsets = [0, 96], sizes = [8, 32], strides = [1, 1]} : vector<8x128xf32> to vector<8x32xf32>
    %204 = arith.mulf %201, %182 : vector<8x32xf32>
    %205 = arith.mulf %200, %202 : vector<8x32xf32>
    %206 = arith.addf %204, %205 : vector<8x32xf32>
    %207 = math.tanh %206 : vector<8x32xf32>
    %208 = arith.mulf %203, %207 : vector<8x32xf32>
    %209 = tpu.concatenate %136, %160, %184, %208 in 1 : vector<8x32xf32>, vector<8x32xf32>, vector<8x32xf32>, vector<8x32xf32> -> vector<8x128xf32>
    %c128_i32_52 = arith.constant 128 : i32
    %210 = arith.muli %c1_i32_27, %c128_i32_52 : i32
    %211 = tpu.assume_multiple %210, 128 : i32
    %c0_53 = arith.constant 0 : index
    %212 = arith.index_cast %211 : i32 to index
    %213 = vector.load %arg4[%c0_53, %212] : memref<8x256xf32, #tpu.memory_space<vmem>>, vector<8x128xf32>
    tpu.vector_store %arg4[%c0_53, %212], %209 {strides = array<i32>} : memref<8x256xf32, #tpu.memory_space<vmem>>, vector<8x128xf32>,
    %c2_i32_54 = arith.constant 2 : i32
    %c0_55 = arith.constant 0 : index
    %c0_56 = arith.constant 0 : index
    %214 = vector.load %arg5[%c0_55, %c0_56] : memref<8x32xf32, #tpu.memory_space<vmem>>, vector<8x32xf32>
    tpu.vector_store %arg5[%c0_55, %c0_56], %208 {strides = array<i32>} : memref<8x32xf32, #tpu.memory_space<vmem>>, vector<8x32xf32>,
    %c0_57 = arith.constant 0 : index
    %c0_58 = arith.constant 0 : index
    %215 = vector.load %arg6[%c0_57, %c0_58] : memref<8x32xf32, #tpu.memory_space<vmem>>, vector<8x32xf32>
    tpu.vector_store %arg6[%c0_57, %c0_58], %206 {strides = array<i32>} : memref<8x32xf32, #tpu.memory_space<vmem>>, vector<8x32xf32>,
    return
  }
  func.func @transform_0(%arg0: i32, %arg1: i32) -> (i32, i32, i32) {
    %c0_i32 = arith.constant 0 : i32
    %c0_i32_0 = arith.constant 0 : i32
    return %arg1, %arg0, %c0_i32 : i32, i32, i32
  }
  func.func @transform_1(%arg0: i32, %arg1: i32) -> (i32, i32) {
    %c0_i32 = arith.constant 0 : i32
    %c0_i32_0 = arith.constant 0 : i32
    %c0_i32_1 = arith.constant 0 : i32
    return %c0_i32, %c0_i32_0 : i32, i32
  }
  func.func @transform_2(%arg0: i32, %arg1: i32) -> (i32, i32) {
    %c0_i32 = arith.constant 0 : i32
    return %arg0, %arg1 : i32, i32
  }
}

</mosaic_0001>

<llo_original>
// kernel: tpu_custom_call.1
$region0: #{tpu_custom_call.1}
  #allocation0 [shape = 'u32[]', space=smem, size = 0x4, offset = 0x4, fixed_abs, tag = 'smem constant byte address 0x4 - core index']
  #allocation1 [shape = 'u32[144,128]{1,0:T(1,128)}', space=vmem, size = 0x12000, scoped, tag = 'internal scratch']
  #allocation2 [shape = 'f32[8,32]{1,0:T(8,128)}', space=vmem, size = 0x1000, scoped, tag = 'scratch operand']
  #allocation3 [shape = 'f32[8,32]{1,0:T(8,128)}', space=vmem, size = 0x1000, scoped, tag = 'scratch operand']
  %s0 = inlined_call_operand.hbm [shape: f32[8,8,128], index: 0, kind: input, shape index: {}]
  %s1 = inlined_call_operand.hbm [shape: bf16[32,128], index: 1, kind: input, shape index: {}]
  %s2 = inlined_call_operand.hbm [shape: f32[8,256], index: 2, kind: output, shape index: {}]
  %s3 = sld [smem:[#allocation0]]
  $region30: #{tpu_custom_call.1} parent=0
    _
  %s5 = ssub.s32 1, %s3
  %s6 = scalar_select 0, %s5, %s3
  $region1: #{tpu_custom_call.1} parent=0
    #allocation4 [shape = 'u8[32768]{0}', space=vmem, size = 0x8000, scoped, tag = 'input window, operand 0, single buffered']
    #allocation5 [shape = 's32[1]{0}', space=sflag, size = 0x4, scoped, tag = 'scoped memory for tpu_custom_call.1']
    #allocation6 [shape = 's32[1]{0}', space=sflag, size = 0x4, scoped, tag = 'scoped memory for tpu_custom_call.1']
    #allocation7 [shape = 'u8[8192]{0}', space=vmem, size = 0x2000, scoped, tag = 'input window, operand 1, single buffered']
    #allocation8 [shape = 's32[1]{0}', space=sflag, size = 0x4, scoped, tag = 'scoped memory for tpu_custom_call.1']
    #allocation9 [shape = 'u8[8192]{0}', space=vmem, size = 0x2000, scoped, tag = 'output window, operand 0, single buffered']
    %7 = vsyncpa [#allocation5], 0
    %8 = vsyncpa [#allocation8], 0
    %9 = vsyncpa [#allocation6], 0
    // Predicated region
    $region2: #{tpu_custom_call.1} parent=1 // pred_check
      _
    $region3: #{tpu_custom_call.1} parent=1 // pred_check_branch
      %11 = sbr.rel (0) target = $region5
    $region4: #{tpu_custom_call.1} parent=1 // pred_region
      %s13 = ssub.s32 1024, 1024
      %14 = vsyncadd [#allocation5], %s13
      %s15 = sshll.u32 [#allocation4], 4
      %s16 = int_to_ptr.vmem [resolvable:$true] %s15
      %21 = dma.hbm_to_vmem [thread:$0]  %s0, 1024, %s16, [#allocation5], 128, 128, 8
    $region5: #{tpu_custom_call.1} parent=1 // pred_fallthru
      _
    // Predicated region
    $region6: #{tpu_custom_call.1} parent=1 // pred_check
      _
    $region7: #{tpu_custom_call.1} parent=1 // pred_check_branch
      %23 = sbr.rel (0) target = $region9
    $region8: #{tpu_custom_call.1} parent=1 // pred_region
      %s25 = ssub.s32 256, 256
      %26 = vsyncadd [#allocation8], %s25
      %s27 = sshll.u32 [#allocation7], 4
      %s28 = int_to_ptr.vmem [resolvable:$true] %s27
      %33 = dma.hbm_to_vmem [thread:$0]  %s1, 256, %s28, [#allocation8], 64, 64, 4
    $region9: #{tpu_custom_call.1} parent=1 // pred_fallthru
      _
    // Predicated region
    $region10: #{tpu_custom_call.1} parent=1 // pred_check
      _
    $region11: #{tpu_custom_call.1} parent=1 // pred_check_branch
      %35 = sbr.rel (0) target = $region13
    $region12: #{tpu_custom_call.1} parent=1 // pred_region
      %36 = dma.done [#allocation5], 1024
    $region13: #{tpu_custom_call.1} parent=1 // pred_fallthru
      _
    // Predicated region
    $region14: #{tpu_custom_call.1} parent=1 // pred_check
      _
    $region15: #{tpu_custom_call.1} parent=1 // pred_check_branch
      %38 = sbr.rel (0) target = $region17
    $region16: #{tpu_custom_call.1} parent=1 // pred_region
      %39 = dma.done [#allocation8], 256
    $region17: #{tpu_custom_call.1} parent=1 // pred_fallthru
      _
    %p41 = scmp.eq.s32.totalorder 0, 0
    // Predicated region
    $region18: #{tpu_custom_call.1} parent=1 // pred_check
      %p42 = pneg %p41
    $region19: #{tpu_custom_call.1} parent=1 // pred_check_branch
      %44 = sbr.rel (%p42) target = $region21
    $region20: #{tpu_custom_call.1} parent=1 // pred_region
      %vm45 = vcmask 261120
      %46 = vst.msk [vmem:[#allocation2] sm:$0xff] %vm45, 0.0
      %47 = vst.msk [vmem:[#allocation3] sm:$0xff] %vm45, 0.0
    $region21: #{tpu_custom_call.1} parent=1 // pred_fallthru
      _
    %v48 = vld [vmem:[#allocation7] sm:$0xf]
    %v49 = vld [vmem:[#allocation7 + $0x4] sm:$0xf]
    %v50 = vld [vmem:[#allocation7 + $0x8] sm:$0xf]
    %v51 = vld [vmem:[#allocation7 + $0xc] sm:$0xf]
    %v52 = vlaneseq
    %v53 = vand.u32 %v52, 127
    %vm54 = vcmp.ge.s32.totalorder %v53, 64
    %vm55 = vcmp.lt.s32.totalorder %v53, 96
    %vm56 = vmand %vm54, %vm55
    %v57 = vld [vmem:[#allocation2] sm:$0xff]
    %v58 = vld [vmem:[#allocation3] sm:$0xff]
    %v59 = vld [vmem:[#allocation4] sm:$0xff]
    %v60 = vpack.c.bf16 %v57, %v57
    %v65 = vunpack.c.l.b16 %v48
    %v66 = vunpack.c.l.b16 %v49
    %v67 = vunpack.c.l.b16 %v50
    %v68 = vunpack.c.l.b16 %v51
    %v69 = vpack.c.b16 %v66, %v65
    %v70 = vpack.c.b16 %v68, %v67
    %vm73 = vcmask 261120
    %v75 = vsel %vm73, %v60, 0
    %77 = vmatprep.subr.bf16.mxu0 0
    %78 = vmatpush1.bf16.msra.mxu0 %v69
    %79 = vmatprep.subr.bf16.mxu0 0
    %80 = vmatpush1.bf16.msra.mxu0 %v70
    %81 = vmatprep.subr.bf16.mxu0 0
    %82 = vmatpush1.bf16.msra.mxu0 0
    %83 = vmatprep.subr.bf16.mxu0 0
    %84 = vmatpush1.bf16.msra.mxu0 0
    %85 = vmatprep.subr.bf16.mxu0 0
    %86 = vmatpush1.bf16.msra.mxu0 0
    %87 = vmatprep.subr.bf16.mxu0 0
    %88 = vmatpush1.bf16.msra.mxu0 0
    %89 = vmatprep.subr.bf16.mxu0 0
    %90 = vmatpush1.bf16.msra.mxu0 0
    %91 = vmatprep.subr.bf16.mxu0 0
    %92 = vmatpush1.bf16.msra.mxu0 0
    %93 = vmatprep.subr.bf16.mxu0 0
    %94 = vmatpush1.bf16.msra.mxu0 0
    %95 = vmatprep.subr.bf16.mxu0 0
    %96 = vmatpush1.bf16.msra.mxu0 0
    %97 = vmatprep.subr.bf16.mxu0 0
    %98 = vmatpush1.bf16.msra.mxu0 0
    %99 = vmatprep.subr.bf16.mxu0 0
    %100 = vmatpush1.bf16.msra.mxu0 0
    %101 = vmatprep.subr.bf16.mxu0 0
    %102 = vmatpush1.bf16.msra.mxu0 0
    %103 = vmatprep.subr.bf16.mxu0 0
    %104 = vmatpush1.bf16.msra.mxu0 0
    %105 = vmatprep.subr.bf16.mxu0 0
    %106 = vmatpush1.bf16.msra.mxu0 0
    %107 = vmatprep.subr.bf16.mxu0 0
    %108 = vmatpush1.bf16.msra.mxu0 0
    %109 = vmatprep.mubr.bf16.mxu0 0
    %110 = vmatmul.mubr.bf16.gmra.mrb[0].mxu0 %v75
    %v111 = vpop.f32.mrb[0].mxu0
    %v112 = vadd.f32 0.0, %v111
    %v113 = vpop.f32.mrb[0].mxu0
    %v114 = vpop.f32.mrb[0].mxu0
    %v115 = vpop.f32.mrb[0].mxu0
    %116 = vdwg.mxu0
    %v117 = vadd.f32 %v59, %v112
    %v118 = vxor.u32 %v117, 2147483648
    %v119 = vmul.f32 %v118, 1.442695
    %v120 = vpow.pop %v119
    %v121 = vadd.f32 %v120, 1.0
    %v122 = vrcp.pop %v121
    %v123 = vmul.f32 1.0, %v122
    %v124 = vtanh.pop %v117
    %v125 = vsel %vm56, %v124, %v123
    %127 = vrot.lane.b32.xlu0 %v58, 32
    %v128 = vpop.permute.xlu0 %127
    %v130 = vmul.f32 %v125, %v128
    %132 = vrot.lane.b32.xlu0 %v125, 64
    %v133 = vpop.permute.xlu0 %132
    %v135 = vmul.f32 %v125, %v133
    %137 = vrot.lane.b32.xlu0 %v135, 32
    %v138 = vpop.permute.xlu0 %137
    %v140 = vadd.f32 %v130, %v138
    %v141 = vtanh.pop %v140
    %143 = vrot.lane.b32.xlu0 %v141, 64
    %v144 = vpop.permute.xlu0 %143
    %v146 = vmul.f32 %v125, %v144
    %s147 = scalar_lea.vmem [#allocation4], 8
    %v148 = vld [vmem:[%s147] sm:$0xff]
    %v149 = vpack.c.bf16 %v146, %v146
    %151 = vrot.lane.b32.xlu0 %v149, 32
    %v152 = vpop.permute.xlu0 %151
    %v154 = vsel %vm73, %v152, 0
    %156 = vmatprep.subr.bf16.mxu0 0
    %157 = vmatpush1.bf16.msra.mxu0 %v69
    %158 = vmatprep.subr.bf16.mxu0 0
    %159 = vmatpush1.bf16.msra.mxu0 %v70
    %160 = vmatprep.subr.bf16.mxu0 0
    %161 = vmatpush1.bf16.msra.mxu0 0
    %162 = vmatprep.subr.bf16.mxu0 0
    %163 = vmatpush1.bf16.msra.mxu0 0
    %164 = vmatprep.subr.bf16.mxu0 0
    %165 = vmatpush1.bf16.msra.mxu0 0
    %166 = vmatprep.subr.bf16.mxu0 0
    %167 = vmatpush1.bf16.msra.mxu0 0
    %168 = vmatprep.subr.bf16.mxu0 0
    %169 = vmatpush1.bf16.msra.mxu0 0
    %170 = vmatprep.subr.bf16.mxu0 0
    %171 = vmatpush1.bf16.msra.mxu0 0
    %172 = vmatprep.subr.bf16.mxu0 0
    %173 = vmatpush1.bf16.msra.mxu0 0
    %174 = vmatprep.subr.bf16.mxu0 0
    %175 = vmatpush1.bf16.msra.mxu0 0
    %176 = vmatprep.subr.bf16.mxu0 0
    %177 = vmatpush1.bf16.msra.mxu0 0
    %178 = vmatprep.subr.bf16.mxu0 0
    %179 = vmatpush1.bf16.msra.mxu0 0
    %180 = vmatprep.subr.bf16.mxu0 0
    %181 = vmatpush1.bf16.msra.mxu0 0
    %182 = vmatprep.subr.bf16.mxu0 0
    %183 = vmatpush1.bf16.msra.mxu0 0
    %184 = vmatprep.subr.bf16.mxu0 0
    %185 = vmatpush1.bf16.msra.mxu0 0
    %186 = vmatprep.subr.bf16.mxu0 0
    %187 = vmatpush1.bf16.msra.mxu0 0
    %188 = vmatprep.mubr.bf16.mxu0 0
    %189 = vmatmul.mubr.bf16.gmra.mrb[0].mxu0 %v154
    %v190 = vpop.f32.mrb[0].mxu0
    %v191 = vadd.f32 0.0, %v190
    %v192 = vpop.f32.mrb[0].mxu0
    %v193 = vpop.f32.mrb[0].mxu0
    %v194 = vpop.f32.mrb[0].mxu0
    %195 = vdwg.mxu0
    %v196 = vadd.f32 %v148, %v191
    %v197 = vxor.u32 %v196, 2147483648
    %v198 = vmul.f32 %v197, 1.442695
    %v199 = vpow.pop %v198
    %v200 = vadd.f32 %v199, 1.0
    %v201 = vrcp.pop %v200
    %v202 = vmul.f32 1.0, %v201
    %v203 = vtanh.pop %v196
    %v204 = vsel %vm56, %v203, %v202
    %v205 = vmul.f32 %v204, %v140
    %207 = vrot.lane.b32.xlu0 %v204, 64
    %v208 = vpop.permute.xlu0 %207
    %v210 = vmul.f32 %v204, %v208
    %212 = vrot.lane.b32.xlu0 %v210, 32
    %v213 = vpop.permute.xlu0 %212
    %v215 = vadd.f32 %v205, %v213
    %v216 = vtanh.pop %v215
    %218 = vrot.lane.b32.xlu0 %v216, 64
    %v219 = vpop.permute.xlu0 %218
    %v221 = vmul.f32 %v204, %v219
    %s222 = scalar_lea.vmem [#allocation4], 16
    %v223 = vld [vmem:[%s222] sm:$0xff]
    %v224 = vpack.c.bf16 %v221, %v221
    %226 = vrot.lane.b32.xlu0 %v224, 32
    %v227 = vpop.permute.xlu0 %226
    %v229 = vsel %vm73, %v227, 0
    %231 = vmatprep.subr.bf16.mxu0 0
    %232 = vmatpush1.bf16.msra.mxu0 %v69
    %233 = vmatprep.subr.bf16.mxu0 0
    %234 = vmatpush1.bf16.msra.mxu0 %v70
    %235 = vmatprep.subr.bf16.mxu0 0
    %236 = vmatpush1.bf16.msra.mxu0 0
    %237 = vmatprep.subr.bf16.mxu0 0
    %238 = vmatpush1.bf16.msra.mxu0 0
    %239 = vmatprep.subr.bf16.mxu0 0
    %240 = vmatpush1.bf16.msra.mxu0 0
    %241 = vmatprep.subr.bf16.mxu0 0
    %242 = vmatpush1.bf16.msra.mxu0 0
    %243 = vmatprep.subr.bf16.mxu0 0
    %244 = vmatpush1.bf16.msra.mxu0 0
    %245 = vmatprep.subr.bf16.mxu0 0
    %246 = vmatpush1.bf16.msra.mxu0 0
    %247 = vmatprep.subr.bf16.mxu0 0
    %248 = vmatpush1.bf16.msra.mxu0 0
    %249 = vmatprep.subr.bf16.mxu0 0
    %250 = vmatpush1.bf16.msra.mxu0 0
    %251 = vmatprep.subr.bf16.mxu0 0
    %252 = vmatpush1.bf16.msra.mxu0 0
    %253 = vmatprep.subr.bf16.mxu0 0
    %254 = vmatpush1.bf16.msra.mxu0 0
    %255 = vmatprep.subr.bf16.mxu0 0
    %256 = vmatpush1.bf16.msra.mxu0 0
    %257 = vmatprep.subr.bf16.mxu0 0
    %258 = vmatpush1.bf16.msra.mxu0 0
    %259 = vmatprep.subr.bf16.mxu0 0
    %260 = vmatpush1.bf16.msra.mxu0 0
    %261 = vmatprep.subr.bf16.mxu0 0
    %262 = vmatpush1.bf16.msra.mxu0 0
    %263 = vmatprep.mubr.bf16.mxu0 0
    %264 = vmatmul.mubr.bf16.gmra.mrb[0].mxu0 %v229
    %v265 = vpop.f32.mrb[0].mxu0
    %v266 = vadd.f32 0.0, %v265
    %v267 = vpop.f32.mrb[0].mxu0
    %v268 = vpop.f32.mrb[0].mxu0
    %v269 = vpop.f32.mrb[0].mxu0
    %270 = vdwg.mxu0
    %v271 = vadd.f32 %v223, %v266
    %v272 = vxor.u32 %v271, 2147483648
    %v273 = vmul.f32 %v272, 1.442695
    %v274 = vpow.pop %v273
    %v275 = vadd.f32 %v274, 1.0
    %v276 = vrcp.pop %v275
    %v277 = vmul.f32 1.0, %v276
    %v278 = vtanh.pop %v271
    %v279 = vsel %vm56, %v278, %v277
    %v280 = vmul.f32 %v279, %v215
    %282 = vrot.lane.b32.xlu0 %v279, 64
    %v283 = vpop.permute.xlu0 %282
    %v285 = vmul.f32 %v279, %v283
    %287 = vrot.lane.b32.xlu0 %v285, 32
    %v288 = vpop.permute.xlu0 %287
    %v290 = vadd.f32 %v280, %v288
    %v291 = vtanh.pop %v290
    %293 = vrot.lane.b32.xlu0 %v291, 64
    %v294 = vpop.permute.xlu0 %293
    %v296 = vmul.f32 %v279, %v294
    %s297 = scalar_lea.vmem [#allocation4], 24
    %v298 = vld [vmem:[%s297] sm:$0xff]
    %v299 = vpack.c.bf16 %v296, %v296
    %301 = vrot.lane.b32.xlu0 %v299, 32
    %v302 = vpop.permute.xlu0 %301
    %v304 = vsel %vm73, %v302, 0
    %306 = vmatprep.subr.bf16.mxu0 0
    %307 = vmatpush1.bf16.msra.mxu0 %v69
    %308 = vmatprep.subr.bf16.mxu0 0
    %309 = vmatpush1.bf16.msra.mxu0 %v70
    %310 = vmatprep.subr.bf16.mxu0 0
    %311 = vmatpush1.bf16.msra.mxu0 0
    %312 = vmatprep.subr.bf16.mxu0 0
    %313 = vmatpush1.bf16.msra.mxu0 0
    %314 = vmatprep.subr.bf16.mxu0 0
    %315 = vmatpush1.bf16.msra.mxu0 0
    %316 = vmatprep.subr.bf16.mxu0 0
    %317 = vmatpush1.bf16.msra.mxu0 0
    %318 = vmatprep.subr.bf16.mxu0 0
    %319 = vmatpush1.bf16.msra.mxu0 0
    %320 = vmatprep.subr.bf16.mxu0 0
    %321 = vmatpush1.bf16.msra.mxu0 0
    %322 = vmatprep.subr.bf16.mxu0 0
    %323 = vmatpush1.bf16.msra.mxu0 0
    %324 = vmatprep.subr.bf16.mxu0 0
    %325 = vmatpush1.bf16.msra.mxu0 0
    %326 = vmatprep.subr.bf16.mxu0 0
    %327 = vmatpush1.bf16.msra.mxu0 0
    %328 = vmatprep.subr.bf16.mxu0 0
    %329 = vmatpush1.bf16.msra.mxu0 0
    %330 = vmatprep.subr.bf16.mxu0 0
    %331 = vmatpush1.bf16.msra.mxu0 0
    %332 = vmatprep.subr.bf16.mxu0 0
    %333 = vmatpush1.bf16.msra.mxu0 0
    %334 = vmatprep.subr.bf16.mxu0 0
    %335 = vmatpush1.bf16.msra.mxu0 0
    %336 = vmatprep.subr.bf16.mxu0 0
    %337 = vmatpush1.bf16.msra.mxu0 0
    %338 = vmatprep.mubr.bf16.mxu0 0
    %339 = vmatmul.mubr.bf16.gmra.mrb[0].mxu0 %v304
    %v340 = vpop.f32.mrb[0].mxu0
    %v341 = vadd.f32 0.0, %v340
    %v342 = vpop.f32.mrb[0].mxu0
    %v343 = vpop.f32.mrb[0].mxu0
    %v344 = vpop.f32.mrb[0].mxu0
    %345 = vdwg.mxu0
    %v346 = vadd.f32 %v298, %v341
    %v347 = vxor.u32 %v346, 2147483648
    %v348 = vmul.f32 %v347, 1.442695
    %v349 = vpow.pop %v348
    %v350 = vadd.f32 %v349, 1.0
    %v351 = vrcp.pop %v350
    %v352 = vmul.f32 1.0, %v351
    %v353 = vtanh.pop %v346
    %v354 = vsel %vm56, %v353, %v352
    %v355 = vmul.f32 %v354, %v290
    %357 = vrot.lane.b32.xlu0 %v354, 64
    %v358 = vpop.permute.xlu0 %357
    %v360 = vmul.f32 %v354, %v358
    %362 = vrot.lane.b32.xlu0 %v360, 32
    %v363 = vpop.permute.xlu0 %362
    %v365 = vadd.f32 %v355, %v363
    %v366 = vtanh.pop %v365
    %368 = vrot.lane.b32.xlu0 %v366, 64
    %v369 = vpop.permute.xlu0 %368
    %v371 = vmul.f32 %v354, %v369
    %373 = vrot.lane.b32.xlu0 %v146, 32
    %v374 = vpop.permute.xlu0 %373
    %377 = vrot.lane.b32.xlu0 %v221, 64
    %v378 = vpop.permute.xlu0 %377
    %381 = vrot.lane.b32.xlu0 %v296, 96
    %v382 = vpop.permute.xlu0 %381
    %v384 = vsel %vm73, %v374, %v378
    %vm385 = vcmask 523264
    %v386 = vsel %vm385, %v384, %v382
    %vm387 = vcmask 785408
    %v388 = vsel %vm387, %v386, %v371
    %389 = vst [vmem:[#allocation9] sm:$0xff] %v388
    %s390 = scalar_lea.vmem [#allocation4], 32
    %v391 = vld [vmem:[%s390] sm:$0xff]
    %v392 = vpack.c.bf16 %v371, %v371
    %394 = vrot.lane.b32.xlu0 %v392, 32
    %v395 = vpop.permute.xlu0 %394
    %v397 = vsel %vm73, %v395, 0
    %399 = vmatprep.subr.bf16.mxu0 0
    %400 = vmatpush1.bf16.msra.mxu0 %v69
    %401 = vmatprep.subr.bf16.mxu0 0
    %402 = vmatpush1.bf16.msra.mxu0 %v70
    %403 = vmatprep.subr.bf16.mxu0 0
    %404 = vmatpush1.bf16.msra.mxu0 0
    %405 = vmatprep.subr.bf16.mxu0 0
    %406 = vmatpush1.bf16.msra.mxu0 0
    %407 = vmatprep.subr.bf16.mxu0 0
    %408 = vmatpush1.bf16.msra.mxu0 0
    %409 = vmatprep.subr.bf16.mxu0 0
    %410 = vmatpush1.bf16.msra.mxu0 0
    %411 = vmatprep.subr.bf16.mxu0 0
    %412 = vmatpush1.bf16.msra.mxu0 0
    %413 = vmatprep.subr.bf16.mxu0 0
    %414 = vmatpush1.bf16.msra.mxu0 0
    %415 = vmatprep.subr.bf16.mxu0 0
    %416 = vmatpush1.bf16.msra.mxu0 0
    %417 = vmatprep.subr.bf16.mxu0 0
    %418 = vmatpush1.bf16.msra.mxu0 0
    %419 = vmatprep.subr.bf16.mxu0 0
    %420 = vmatpush1.bf16.msra.mxu0 0
    %421 = vmatprep.subr.bf16.mxu0 0
    %422 = vmatpush1.bf16.msra.mxu0 0
    %423 = vmatprep.subr.bf16.mxu0 0
    %424 = vmatpush1.bf16.msra.mxu0 0
    %425 = vmatprep.subr.bf16.mxu0 0
    %426 = vmatpush1.bf16.msra.mxu0 0
    %427 = vmatprep.subr.bf16.mxu0 0
    %428 = vmatpush1.bf16.msra.mxu0 0
    %429 = vmatprep.subr.bf16.mxu0 0
    %430 = vmatpush1.bf16.msra.mxu0 0
    %431 = vmatprep.mubr.bf16.mxu0 0
    %432 = vmatmul.mubr.bf16.gmra.mrb[0].mxu0 %v397
    %v433 = vpop.f32.mrb[0].mxu0
    %v434 = vadd.f32 0.0, %v433
    %v435 = vpop.f32.mrb[0].mxu0
    %v436 = vpop.f32.mrb[0].mxu0
    %v437 = vpop.f32.mrb[0].mxu0
    %438 = vdwg.mxu0
    %v439 = vadd.f32 %v391, %v434
    %v440 = vxor.u32 %v439, 2147483648
    %v441 = vmul.f32 %v440, 1.442695
    %v442 = vpow.pop %v441
    %v443 = vadd.f32 %v442, 1.0
    %v444 = vrcp.pop %v443
    %v445 = vmul.f32 1.0, %v444
    %v446 = vtanh.pop %v439
    %v447 = vsel %vm56, %v446, %v445
    %v448 = vmul.f32 %v447, %v365
    %450 = vrot.lane.b32.xlu0 %v447, 64
    %v451 = vpop.permute.xlu0 %450
    %v453 = vmul.f32 %v447, %v451
    %455 = vrot.lane.b32.xlu0 %v453, 32
    %v456 = vpop.permute.xlu0 %455
    %v458 = vadd.f32 %v448, %v456
    %v459 = vtanh.pop %v458
    %461 = vrot.lane.b32.xlu0 %v459, 64
    %v462 = vpop.permute.xlu0 %461
    %v464 = vmul.f32 %v447, %v462
    %s465 = scalar_lea.vmem [#allocation4], 40
    %v466 = vld [vmem:[%s465] sm:$0xff]
    %v467 = vpack.c.bf16 %v464, %v464
    %469 = vrot.lane.b32.xlu0 %v467, 32
    %v470 = vpop.permute.xlu0 %469
    %v472 = vsel %vm73, %v470, 0
    %474 = vmatprep.subr.bf16.mxu0 0
    %475 = vmatpush1.bf16.msra.mxu0 %v69
    %476 = vmatprep.subr.bf16.mxu0 0
    %477 = vmatpush1.bf16.msra.mxu0 %v70
    %478 = vmatprep.subr.bf16.mxu0 0
    %479 = vmatpush1.bf16.msra.mxu0 0
    %480 = vmatprep.subr.bf16.mxu0 0
    %481 = vmatpush1.bf16.msra.mxu0 0
    %482 = vmatprep.subr.bf16.mxu0 0
    %483 = vmatpush1.bf16.msra.mxu0 0
    %484 = vmatprep.subr.bf16.mxu0 0
    %485 = vmatpush1.bf16.msra.mxu0 0
    %486 = vmatprep.subr.bf16.mxu0 0
    %487 = vmatpush1.bf16.msra.mxu0 0
    %488 = vmatprep.subr.bf16.mxu0 0
    %489 = vmatpush1.bf16.msra.mxu0 0
    %490 = vmatprep.subr.bf16.mxu0 0
    %491 = vmatpush1.bf16.msra.mxu0 0
    %492 = vmatprep.subr.bf16.mxu0 0
    %493 = vmatpush1.bf16.msra.mxu0 0
    %494 = vmatprep.subr.bf16.mxu0 0
    %495 = vmatpush1.bf16.msra.mxu0 0
    %496 = vmatprep.subr.bf16.mxu0 0
    %497 = vmatpush1.bf16.msra.mxu0 0
    %498 = vmatprep.subr.bf16.mxu0 0
    %499 = vmatpush1.bf16.msra.mxu0 0
    %500 = vmatprep.subr.bf16.mxu0 0
    %501 = vmatpush1.bf16.msra.mxu0 0
    %502 = vmatprep.subr.bf16.mxu0 0
    %503 = vmatpush1.bf16.msra.mxu0 0
    %504 = vmatprep.subr.bf16.mxu0 0
    %505 = vmatpush1.bf16.msra.mxu0 0
    %506 = vmatprep.mubr.bf16.mxu0 0
    %507 = vmatmul.mubr.bf16.gmra.mrb[0].mxu0 %v472
    %v508 = vpop.f32.mrb[0].mxu0
    %v509 = vadd.f32 0.0, %v508
    %v510 = vpop.f32.mrb[0].mxu0
    %v511 = vpop.f32.mrb[0].mxu0
    %v512 = vpop.f32.mrb[0].mxu0
    %513 = vdwg.mxu0
    %v514 = vadd.f32 %v466, %v509
    %v515 = vxor.u32 %v514, 2147483648
    %v516 = vmul.f32 %v515, 1.442695
    %v517 = vpow.pop %v516
    %v518 = vadd.f32 %v517, 1.0
    %v519 = vrcp.pop %v518
    %v520 = vmul.f32 1.0, %v519
    %v521 = vtanh.pop %v514
    %v522 = vsel %vm56, %v521, %v520
    %v523 = vmul.f32 %v522, %v458
    %525 = vrot.lane.b32.xlu0 %v522, 64
    %v526 = vpop.permute.xlu0 %525
    %v528 = vmul.f32 %v522, %v526
    %530 = vrot.lane.b32.xlu0 %v528, 32
    %v531 = vpop.permute.xlu0 %530
    %v533 = vadd.f32 %v523, %v531
    %v534 = vtanh.pop %v533
    %536 = vrot.lane.b32.xlu0 %v534, 64
    %v537 = vpop.permute.xlu0 %536
    %v539 = vmul.f32 %v522, %v537
    %s540 = scalar_lea.vmem [#allocation4], 48
    %v541 = vld [vmem:[%s540] sm:$0xff]
    %v542 = vpack.c.bf16 %v539, %v539
    %544 = vrot.lane.b32.xlu0 %v542, 32
    %v545 = vpop.permute.xlu0 %544
    %v547 = vsel %vm73, %v545, 0
    %549 = vmatprep.subr.bf16.mxu0 0
    %550 = vmatpush1.bf16.msra.mxu0 %v69
    %551 = vmatprep.subr.bf16.mxu0 0
    %552 = vmatpush1.bf16.msra.mxu0 %v70
    %553 = vmatprep.subr.bf16.mxu0 0
    %554 = vmatpush1.bf16.msra.mxu0 0
    %555 = vmatprep.subr.bf16.mxu0 0
    %556 = vmatpush1.bf16.msra.mxu0 0
    %557 = vmatprep.subr.bf16.mxu0 0
    %558 = vmatpush1.bf16.msra.mxu0 0
    %559 = vmatprep.subr.bf16.mxu0 0
    %560 = vmatpush1.bf16.msra.mxu0 0
    %561 = vmatprep.subr.bf16.mxu0 0
    %562 = vmatpush1.bf16.msra.mxu0 0
    %563 = vmatprep.subr.bf16.mxu0 0
    %564 = vmatpush1.bf16.msra.mxu0 0
    %565 = vmatprep.subr.bf16.mxu0 0
    %566 = vmatpush1.bf16.msra.mxu0 0
    %567 = vmatprep.subr.bf16.mxu0 0
    %568 = vmatpush1.bf16.msra.mxu0 0
    %569 = vmatprep.subr.bf16.mxu0 0
    %570 = vmatpush1.bf16.msra.mxu0 0
    %571 = vmatprep.subr.bf16.mxu0 0
    %572 = vmatpush1.bf16.msra.mxu0 0
    %573 = vmatprep.subr.bf16.mxu0 0
    %574 = vmatpush1.bf16.msra.mxu0 0
    %575 = vmatprep.subr.bf16.mxu0 0
    %576 = vmatpush1.bf16.msra.mxu0 0
    %577 = vmatprep.subr.bf16.mxu0 0
    %578 = vmatpush1.bf16.msra.mxu0 0
    %579 = vmatprep.subr.bf16.mxu0 0
    %580 = vmatpush1.bf16.msra.mxu0 0
    %581 = vmatprep.mubr.bf16.mxu0 0
    %582 = vmatmul.mubr.bf16.gmra.mrb[0].mxu0 %v547
    %v583 = vpop.f32.mrb[0].mxu0
    %v584 = vadd.f32 0.0, %v583
    %v585 = vpop.f32.mrb[0].mxu0
    %v586 = vpop.f32.mrb[0].mxu0
    %v587 = vpop.f32.mrb[0].mxu0
    %588 = vdwg.mxu0
    %v589 = vadd.f32 %v541, %v584
    %v590 = vxor.u32 %v589, 2147483648
    %v591 = vmul.f32 %v590, 1.442695
    %v592 = vpow.pop %v591
    %v593 = vadd.f32 %v592, 1.0
    %v594 = vrcp.pop %v593
    %v595 = vmul.f32 1.0, %v594
    %v596 = vtanh.pop %v589
    %v597 = vsel %vm56, %v596, %v595
    %v598 = vmul.f32 %v597, %v533
    %600 = vrot.lane.b32.xlu0 %v597, 64
    %v601 = vpop.permute.xlu0 %600
    %v603 = vmul.f32 %v597, %v601
    %605 = vrot.lane.b32.xlu0 %v603, 32
    %v606 = vpop.permute.xlu0 %605
    %v608 = vadd.f32 %v598, %v606
    %v609 = vtanh.pop %v608
    %611 = vrot.lane.b32.xlu0 %v609, 64
    %v612 = vpop.permute.xlu0 %611
    %v614 = vmul.f32 %v597, %v612
    %s615 = scalar_lea.vmem [#allocation4], 56
    %v616 = vld [vmem:[%s615] sm:$0xff]
    %v617 = vpack.c.bf16 %v614, %v614
    %619 = vrot.lane.b32.xlu0 %v617, 32
    %v620 = vpop.permute.xlu0 %619
    %v622 = vsel %vm73, %v620, 0
    %624 = vmatprep.subr.bf16.mxu0 0
    %625 = vmatpush1.bf16.msra.mxu0 %v69
    %626 = vmatprep.subr.bf16.mxu0 0
    %627 = vmatpush1.bf16.msra.mxu0 %v70
    %628 = vmatprep.subr.bf16.mxu0 0
    %629 = vmatpush1.bf16.msra.mxu0 0
    %630 = vmatprep.subr.bf16.mxu0 0
    %631 = vmatpush1.bf16.msra.mxu0 0
    %632 = vmatprep.subr.bf16.mxu0 0
    %633 = vmatpush1.bf16.msra.mxu0 0
    %634 = vmatprep.subr.bf16.mxu0 0
    %635 = vmatpush1.bf16.msra.mxu0 0
    %636 = vmatprep.subr.bf16.mxu0 0
    %637 = vmatpush1.bf16.msra.mxu0 0
    %638 = vmatprep.subr.bf16.mxu0 0
    %639 = vmatpush1.bf16.msra.mxu0 0
    %640 = vmatprep.subr.bf16.mxu0 0
    %641 = vmatpush1.bf16.msra.mxu0 0
    %642 = vmatprep.subr.bf16.mxu0 0
    %643 = vmatpush1.bf16.msra.mxu0 0
    %644 = vmatprep.subr.bf16.mxu0 0
    %645 = vmatpush1.bf16.msra.mxu0 0
    %646 = vmatprep.subr.bf16.mxu0 0
    %647 = vmatpush1.bf16.msra.mxu0 0
    %648 = vmatprep.subr.bf16.mxu0 0
    %649 = vmatpush1.bf16.msra.mxu0 0
    %650 = vmatprep.subr.bf16.mxu0 0
    %651 = vmatpush1.bf16.msra.mxu0 0
    %652 = vmatprep.subr.bf16.mxu0 0
    %653 = vmatpush1.bf16.msra.mxu0 0
    %654 = vmatprep.subr.bf16.mxu0 0
    %655 = vmatpush1.bf16.msra.mxu0 0
    %656 = vmatprep.mubr.bf16.mxu0 0
    %657 = vmatmul.mubr.bf16.gmra.mrb[0].mxu0 %v622
    %v658 = vpop.f32.mrb[0].mxu0
    %v659 = vadd.f32 0.0, %v658
    %v660 = vpop.f32.mrb[0].mxu0
    %v661 = vpop.f32.mrb[0].mxu0
    %v662 = vpop.f32.mrb[0].mxu0
    %663 = vdwg.mxu0
    %v664 = vadd.f32 %v616, %v659
    %v665 = vxor.u32 %v664, 2147483648
    %v666 = vmul.f32 %v665, 1.442695
    %v667 = vpow.pop %v666
    %v668 = vadd.f32 %v667, 1.0
    %v669 = vrcp.pop %v668
    %v670 = vmul.f32 1.0, %v669
    %v671 = vtanh.pop %v664
    %v672 = vsel %vm56, %v671, %v670
    %v673 = vmul.f32 %v672, %v608
    %675 = vrot.lane.b32.xlu0 %v672, 64
    %v676 = vpop.permute.xlu0 %675
    %v678 = vmul.f32 %v672, %v676
    %680 = vrot.lane.b32.xlu0 %v678, 32
    %v681 = vpop.permute.xlu0 %680
    %v683 = vadd.f32 %v673, %v681
    %v684 = vtanh.pop %v683
    %686 = vrot.lane.b32.xlu0 %v684, 64
    %v687 = vpop.permute.xlu0 %686
    %v689 = vmul.f32 %v672, %v687
    %691 = vrot.lane.b32.xlu0 %v464, 32
    %v692 = vpop.permute.xlu0 %691
    %695 = vrot.lane.b32.xlu0 %v539, 64
    %v696 = vpop.permute.xlu0 %695
    %699 = vrot.lane.b32.xlu0 %v614, 96
    %v700 = vpop.permute.xlu0 %699
    %v702 = vsel %vm73, %v692, %v696
    %v703 = vsel %vm385, %v702, %v700
    %v704 = vsel %vm387, %v703, %v689
    %s705 = scalar_lea.vmem [#allocation9], 8
    %706 = vst [vmem:[%s705] sm:$0xff] %v704
    %708 = vrot.lane.b32.xlu0 %v689, 32
    %v709 = vpop.permute.xlu0 %708
    %711 = vst.msk [vmem:[#allocation2] sm:$0xff] %vm73, %v709
    %713 = vrot.lane.b32.xlu0 %v683, 96
    %v714 = vpop.permute.xlu0 %713
    %716 = vst.msk [vmem:[#allocation3] sm:$0xff] %vm73, %v714
    // Predicated region
    $region22: #{tpu_custom_call.1} parent=1 // pred_check
      _
    $region23: #{tpu_custom_call.1} parent=1 // pred_check_branch
      %718 = sbr.rel (0) target = $region25
    $region24: #{tpu_custom_call.1} parent=1 // pred_region
      %s720 = ssub.s32 256, 256
      %721 = vsyncadd [#allocation6], %s720
      %s723 = sshll.u32 [#allocation9], 4
      %s724 = int_to_ptr.vmem [resolvable:$true] %s723
      %726 = dma.vmem_to_hbm [thread:$0]  %s724, 256, %s2, [#allocation6]
    $region25: #{tpu_custom_call.1} parent=1 // pred_fallthru
      _
    // Predicated region
    $region26: #{tpu_custom_call.1} parent=1 // pred_check
      _
    $region27: #{tpu_custom_call.1} parent=1 // pred_check_branch
      %728 = sbr.rel (0) target = $region29
    $region28: #{tpu_custom_call.1} parent=1 // pred_region
      %729 = dma.done [#allocation6], 256
    $region29: #{tpu_custom_call.1} parent=1 // pred_fallthru
      _
    %730 = vsyncpa [#allocation5], 1
    %731 = vsyncpa [#allocation8], 1
    %732 = vsyncpa [#allocation6], 1

</llo_original>
